<compile_context>
chip_gen: v6e
topology: v6e:2x2x1
jax: 0.10.0
libtpu: 0.0.40
codegen_flags: <defaults>
</compile_context>

<pallas_src>
import functools

import jax
import jax.numpy as jnp
from jax.experimental import pallas as pl
from jax.experimental.pallas import tpu as pltpu

_BN_EPS = 1e-5
_VMEM_LIMIT = 32 * 1024 * 1024        # raises v5e default; == v6e/v7x default
_FAST_PATH_BYTES = 12 * 1024 * 1024   # estimated-VMEM gate for the fused path
_PASS1_TILE_ELEMS = 2 * 1024 * 1024   # <= 8 MiB f32 per tile (input only)
_PASS2_TILE_ELEMS = 1 * 1024 * 1024   # <= 4 MiB f32 per tile (input + output)
_MAX_LANE_TILE_P1 = 8192              # keeps pass-1's unrolled chunk loop <= 64 iters
_MAX_ROW_TILE = 256


def _round_up(v, m):
    return (v + m - 1) // m * m


def _pick_tile(dim, base, cap):
    """Largest divisor of `dim` that is a multiple of `base` and <= cap.

    `dim` is always a multiple of `base` here (the wrapper pads), so a valid
    tile >= base always exists and the giant-block fallback is never hit.
    """
    if dim <= base:
        return dim
    best = base if dim % base == 0 else dim
    t = base
    limit = min(dim, max(cap, base))
    while t <= limit:
        if dim % t == 0:
            best = t
        t += base
    return best


# ----------------------------------------------------------------------------
# Fast path: whole slab resident in VMEM, single fused kernel.
# ----------------------------------------------------------------------------
def _fused_bn_relu_kernel(x_ref, gamma_ref, beta_ref, o_ref, *, inv_count):
    x = x_ref[...].astype(jnp.float32)                               # (n, c, m)
    s = jnp.sum(jnp.sum(x, axis=2, keepdims=True), axis=0, keepdims=True)
    sq = jnp.sum(jnp.sum(x * x, axis=2, keepdims=True), axis=0, keepdims=True)
    mean = s * inv_count                                             # (1, c, 1)
    var = jnp.maximum(sq * inv_count - mean * mean, 0.0)             # biased, clamped
    inv_std = jax.lax.rsqrt(var + _BN_EPS)
    scale = gamma_ref[...].astype(jnp.float32) * inv_std             # (1, c, 1)
    bias = beta_ref[...].astype(jnp.float32) - mean * scale
    o_ref[...] = jnp.maximum(x * scale + bias, 0.0).astype(o_ref.dtype)


def _fused_forward(x_nchw, gamma, beta):
    n, c, h, w = x_nchw.shape
    m = h * w
    x3 = x_nchw.reshape(n, c, m)
    g3 = gamma.reshape(1, c, 1).astype(jnp.float32)
    b3 = beta.reshape(1, c, 1).astype(jnp.float32)
    out3 = pl.pallas_call(
        functools.partial(_fused_bn_relu_kernel, inv_count=1.0 / float(n * m)),
        out_shape=jax.ShapeDtypeStruct((n, c, m), x_nchw.dtype),
        grid=(1,),
        in_specs=[pl.BlockSpec((n, c, m), lambda i: (0, 0, 0)),
                  pl.BlockSpec((1, c, 1), lambda i: (0, 0, 0)),
                  pl.BlockSpec((1, c, 1), lambda i: (0, 0, 0))],
        out_specs=pl.BlockSpec((n, c, m), lambda i: (0, 0, 0)),
        compiler_params=pltpu.CompilerParams(
            dimension_semantics=("arbitrary",),
            vmem_limit_bytes=_VMEM_LIMIT),
    )(x3, g3, b3)
    return out3.reshape(n, c, h, w)


# ----------------------------------------------------------------------------
# Two-pass path: row statistics, tiny finalize, fused affine + ReLU.
# ----------------------------------------------------------------------------
def _row_stats_kernel(x_ref, sum_ref, sq_ref, acc_sum_ref, acc_sq_ref):
    """Accumulate per-row sum / sum-of-squares over the inner lane-tile axis.

    The (tr, 128) partial sums live in VMEM scratch and are updated with pure
    VPU adds; the cross-lane XLU reduce + narrow stores run once per row tile.
    """
    j = pl.program_id(2)

    @pl.when(j == 0)
    def _():
        acc_sum_ref[...] = jnp.zeros_like(acc_sum_ref)
        acc_sq_ref[...] = jnp.zeros_like(acc_sq_ref)

    num_chunks = x_ref.shape[1] // 128
    ps = acc_sum_ref[...]
    pq = acc_sq_ref[...]
    for ck in range(num_chunks):                 # static, <= 64 iterations
        xc = x_ref[:, ck * 128:(ck + 1) * 128].astype(jnp.float32)
        ps = ps + xc
        pq = pq + xc * xc
    acc_sum_ref[...] = ps
    acc_sq_ref[...] = pq

    @pl.when(j == pl.num_programs(2) - 1)
    def _():
        sum_ref[...] = jnp.sum(acc_sum_ref[...], axis=1, keepdims=True)
        sq_ref[...] = jnp.sum(acc_sq_ref[...], axis=1, keepdims=True)


def _scale_bias_relu_kernel(x_ref, scale_ref, bias_ref, o_ref):
    """y = max(x * scale + bias, 0) with per-row (per-channel) scale/bias."""
    x = x_ref[...].astype(jnp.float32)
    y = jnp.maximum(x * scale_ref[...] + bias_ref[...], 0.0)
    o_ref[...] = y.astype(o_ref.dtype)


def _two_pass_forward(x_nchw, gamma, beta, *, sub):
    n, c, h, w = x_nchw.shape
    r, m = n * c, h * w
    rp, mp = _round_up(r, sub), _round_up(m, 128)

    x_rm = x_nchw.reshape(r, m)                  # contiguous reshape: no copy
    if rp != r or mp != m:
        # Zero padding contributes nothing to sum / sum-of-squares; padded
        # rows/lanes are sliced off after pass 2.
        x_rm = jnp.pad(x_rm, ((0, rp - r), (0, mp - m)))

    tr = _pick_tile(rp, sub, _MAX_ROW_TILE)
    tm1 = _pick_tile(mp, 128, min(_MAX_LANE_TILE_P1,
                                  max(128, (_PASS1_TILE_ELEMS // tr) // 128 * 128)))
    tm2 = _pick_tile(mp, 128, max(128, (_PASS2_TILE_ELEMS // tr) // 128 * 128))

    r_tiles = rp // tr
    m_tiles1 = mp // tm1
    # Keep a >=2 "parallel" grid axis for pass 1 when N*C is small, so the
    # stats pass still spans both TensorCores on v7x.
    n_chunks = 2 if (r_tiles == 1 and m_tiles1 >= 2 and m_tiles1 % 2 == 0) else 1
    m_inner = m_tiles1 // n_chunks

    # ---- Pass 1: per-(n,c)-row statistics, deferred cross-lane reduction ----
    row_sum_p, row_sq_p = pl.pallas_call(
        _row_stats_kernel,
        out_shape=(jax.ShapeDtypeStruct((rp, n_chunks), jnp.float32),
                   jax.ShapeDtypeStruct((rp, n_chunks), jnp.float32)),
        grid=(n_chunks, r_tiles, m_inner),
        in_specs=[pl.BlockSpec((tr, tm1),
                               lambda p, i, j: (i, p * m_inner + j))],
        out_specs=(pl.BlockSpec((tr, 1), lambda p, i, j: (i, p)),
                   pl.BlockSpec((tr, 1), lambda p, i, j: (i, p))),
        scratch_shapes=[pltpu.VMEM((tr, 128), jnp.float32),
                        pltpu.VMEM((tr, 128), jnp.float32)],
        compiler_params=pltpu.CompilerParams(
            dimension_semantics=("parallel", "parallel", "arbitrary"),
            vmem_limit_bytes=_VMEM_LIMIT),
    )(x_rm)

    # ---- Tiny per-channel finalize in plain JAX (C elements) ----------------
    # The latency-bound small-activation regime is served by the fused fast
    # path; here this dispatch is negligible next to the two HBM passes.
    count = float(n * m)                         # true count (pad lanes excluded)
    row_sum = jnp.sum(row_sum_p, axis=1)[:r]
    row_sq = jnp.sum(row_sq_p, axis=1)[:r]
    ch_sum = row_sum.reshape(n, c).sum(axis=0)
    ch_sq = row_sq.reshape(n, c).sum(axis=0)
    mean = ch_sum / count
    var = jnp.maximum(ch_sq / count - mean * mean, 0.0)   # biased, clamped
    inv_std = jax.lax.rsqrt(var + _BN_EPS)
    scale = gamma.astype(jnp.float32) * inv_std           # (C,)
    bias = beta.astype(jnp.float32) - mean * scale        # (C,)
    row_scale = jnp.tile(scale, n)                        # row n*C + c -> scale[c]
    row_bias = jnp.tile(bias, n)
    if rp != r:
        row_scale = jnp.pad(row_scale, (0, rp - r))
        row_bias = jnp.pad(row_bias, (0, rp - r))
    row_scale = row_scale.reshape(rp, 1)
    row_bias = row_bias.reshape(rp, 1)

    # ---- Pass 2: fused affine + ReLU, fully parallel lane-dense tiles -------
    out_rm = pl.pallas_call(
        _scale_bias_relu_kernel,
        out_shape=jax.ShapeDtypeStruct((rp, mp), x_nchw.dtype),
        grid=(r_tiles, mp // tm2),
        in_specs=[pl.BlockSpec((tr, tm2), lambda i, j: (i, j)),
                  pl.BlockSpec((tr, 1), lambda i, j: (i, 0)),
                  pl.BlockSpec((tr, 1), lambda i, j: (i, 0))],
        out_specs=pl.BlockSpec((tr, tm2), lambda i, j: (i, j)),
        compiler_params=pltpu.CompilerParams(
            dimension_semantics=("parallel", "parallel"),
            vmem_limit_bytes=_VMEM_LIMIT),
    )(x_rm, row_scale, row_bias)

    if rp != r or mp != m:
        out_rm = out_rm[:r, :m]
    return out_rm.reshape(n, c, h, w)


# ----------------------------------------------------------------------------
# Public entry point
# ----------------------------------------------------------------------------
def basic_layer_forward(x_nchw, gamma, beta, *, force_two_pass=False):
    """BasicLayer.forward: identity weight_call -> BatchNorm2d (train) -> ReLU.

    x_nchw: (N, C, H, W)    gamma, beta: (C,)
    """
    n, c, h, w = x_nchw.shape
    m = h * w
    itemsize = jnp.dtype(x_nchw.dtype).itemsize
    sub = max(8, 32 // itemsize)          # sublane multiple: 8 f32 / 16 bf16 / 32 int8

    if not force_two_pass:
        # Rough resident-VMEM estimate for the fused kernel (in + out + f32 temps,
        # with (8,128) layout padding); keep well under the 32 MiB scoped limit.
        est_bytes = n * _round_up(c, 8) * _round_up(m, 128) * (2 * itemsize + 8)
        if est_bytes <= _FAST_PATH_BYTES:
            return _fused_forward(x_nchw, gamma, beta)
    return _two_pass_forward(x_nchw, gamma, beta, sub=sub)


def _reference(x_nchw, gamma, beta):
    xf = x_nchw.astype(jnp.float32)
    mean = jnp.mean(xf, axis=(0, 2, 3), keepdims=True)
    var = jnp.mean((xf - mean) ** 2, axis=(0, 2, 3), keepdims=True)
    g = gamma.reshape(1, -1, 1, 1)
    b = beta.reshape(1, -1, 1, 1)
    y = (xf - mean) * jax.lax.rsqrt(var + _BN_EPS) * g + b
    return jnp.maximum(y, 0.0).astype(x_nchw.dtype)


if __name__ == "__main__":
    key = jax.random.PRNGKey(0)
    kx, kg, kb, kx2 = jax.random.split(key, 4)

    fwd = jax.jit(basic_layer_forward, static_argnames=("force_two_pass",))

    # --- Fast (fused single-pass) path: demo shape -------------------------
    N, C, H, W = 2, 4, 16, 16              # in_channels == out_channels == 4
    x = jax.random.normal(kx, (N, C, H, W), dtype=jnp.float32)
    gamma = 1.0 + 0.1 * jax.random.normal(kg, (C,), dtype=jnp.float32)
    beta = 0.1 * jax.random.normal(kb, (C,), dtype=jnp.float32)

    out = jax.block_until_ready(fwd(x, gamma, beta))
    ref = _reference(x, gamma, beta)
    assert out.shape == (N, C, H, W)
    assert jnp.allclose(out, ref, atol=1e-4, rtol=1e-4), "fast path mismatch"

    # --- Two-pass tiled path (also exercises lane padding: H*W % 128 != 0) --
    N2, C2, H2, W2 = 2, 4, 24, 24
    x2 = jax.random.normal(kx2, (N2, C2, H2, W2), dtype=jnp.float32)
    out2 = jax.block_until_ready(fwd(x2, gamma, beta, force_two_pass=True))
    ref2 = _reference(x2, gamma, beta)
    assert out2.shape == (N2, C2, H2, W2)
    assert jnp.allclose(out2, ref2, atol=1e-4, rtol=1e-4), "two-pass mismatch"

    print("KERNEL_OK")
</pallas_src>

<mosaic_0001>
module attributes {stable_mosaic.version = 11 : i64} {
  func.func @_fused_bn_relu_kernel(%arg0: i32, %arg1: memref<2x4x256xf32, #tpu.memory_space<vmem>>, %arg2: memref<1x4x1xf32, #tpu.memory_space<vmem>>, %arg3: memref<1x4x1xf32, #tpu.memory_space<vmem>>, %arg4: memref<2x4x256xf32, #tpu.memory_space<vmem>>) attributes {dimension_semantics = [#tpu.dimension_semantics<arbitrary>], iteration_bounds = array<i64: 1>, scalar_prefetch = 0 : i64, scratch_operands = 0 : i64, tpu.core_type = #tpu.core_type<tc>, window_params = [{pipeline_mode = #tpu.pipeline_mode<synchronous>, transform_indices = @transform_0, window_bounds = array<i64: 2, 4, 256>}, {pipeline_mode = #tpu.pipeline_mode<synchronous>, transform_indices = @transform_1, window_bounds = array<i64: 1, 4, 1>}, {pipeline_mode = #tpu.pipeline_mode<synchronous>, transform_indices = @transform_2, window_bounds = array<i64: 1, 4, 1>}, {pipeline_mode = #tpu.pipeline_mode<synchronous>, transform_indices = @transform_3, window_bounds = array<i64: 2, 4, 256>}]} {
    %c0 = arith.constant 0 : index
    %c0_0 = arith.constant 0 : index
    %c0_1 = arith.constant 0 : index
    %0 = vector.load %arg1[%c0, %c0_0, %c0_1] : memref<2x4x256xf32, #tpu.memory_space<vmem>>, vector<2x4x256xf32>
    %cst = arith.constant dense<0.000000e+00> : vector<2x4xf32>
    %1 = vector.multi_reduction <add>, %0, %cst [2] : vector<2x4x256xf32> to vector<2x4xf32>
    %2 = vector.shape_cast %1 : vector<2x4xf32> to vector<2x4x1xf32>
    %cst_2 = arith.constant dense<0.000000e+00> : vector<4x1xf32>
    %3 = vector.multi_reduction <add>, %2, %cst_2 [0] : vector<2x4x1xf32> to vector<4x1xf32>
    %4 = vector.shape_cast %3 : vector<4x1xf32> to vector<1x4x1xf32>
    %5 = arith.mulf %0, %0 : vector<2x4x256xf32>
    %cst_3 = arith.constant dense<0.000000e+00> : vector<2x4xf32>
    %6 = vector.multi_reduction <add>, %5, %cst_3 [2] : vector<2x4x256xf32> to vector<2x4xf32>
    %7 = vector.shape_cast %6 : vector<2x4xf32> to vector<2x4x1xf32>
    %cst_4 = arith.constant dense<0.000000e+00> : vector<4x1xf32>
    %8 = vector.multi_reduction <add>, %7, %cst_4 [0] : vector<2x4x1xf32> to vector<4x1xf32>
    %9 = vector.shape_cast %8 : vector<4x1xf32> to vector<1x4x1xf32>
    %cst_5 = arith.constant 0.001953125 : f32
    %10 = vector.broadcast %cst_5 : f32 to vector<1x4x1xf32>
    %11 = arith.mulf %4, %10 : vector<1x4x1xf32>
    %cst_6 = arith.constant 0.001953125 : f32
    %12 = vector.broadcast %cst_6 : f32 to vector<1x4x1xf32>
    %13 = arith.mulf %9, %12 : vector<1x4x1xf32>
    %14 = arith.mulf %11, %11 : vector<1x4x1xf32>
    %15 = arith.subf %13, %14 : vector<1x4x1xf32>
    %cst_7 = arith.constant 0.000000e+00 : f32
    %16 = vector.broadcast %cst_7 : f32 to vector<1x4x1xf32>
    %17 = arith.maximumf %15, %16 : vector<1x4x1xf32>
    %cst_8 = arith.constant 9.99999974E-6 : f32
    %18 = vector.broadcast %cst_8 : f32 to vector<1x4x1xf32>
    %19 = arith.addf %17, %18 : vector<1x4x1xf32>
    %20 = math.rsqrt %19 : vector<1x4x1xf32>
    %c0_9 = arith.constant 0 : index
    %c0_10 = arith.constant 0 : index
    %c0_11 = arith.constant 0 : index
    %21 = vector.load %arg2[%c0_9, %c0_10, %c0_11] : memref<1x4x1xf32, #tpu.memory_space<vmem>>, vector<1x4x1xf32>
    %22 = arith.mulf %21, %20 : vector<1x4x1xf32>
    %c0_12 = arith.constant 0 : index
    %c0_13 = arith.constant 0 : index
    %c0_14 = arith.constant 0 : index
    %23 = vector.load %arg3[%c0_12, %c0_13, %c0_14] : memref<1x4x1xf32, #tpu.memory_space<vmem>>, vector<1x4x1xf32>
    %24 = arith.mulf %11, %22 : vector<1x4x1xf32>
    %25 = arith.subf %23, %24 : vector<1x4x1xf32>
    %26 = vector.broadcast %22 : vector<1x4x1xf32> to vector<2x4x256xf32>
    %27 = arith.mulf %0, %26 : vector<2x4x256xf32>
    %28 = vector.broadcast %25 : vector<1x4x1xf32> to vector<2x4x256xf32>
    %29 = arith.addf %27, %28 : vector<2x4x256xf32>
    %cst_15 = arith.constant 0.000000e+00 : f32
    %30 = vector.broadcast %cst_15 : f32 to vector<2x4x256xf32>
    %31 = arith.maximumf %29, %30 : vector<2x4x256xf32>
    %c0_16 = arith.constant 0 : index
    %c0_17 = arith.constant 0 : index
    %c0_18 = arith.constant 0 : index
    %32 = vector.load %arg4[%c0_16, %c0_17, %c0_18] : memref<2x4x256xf32, #tpu.memory_space<vmem>>, vector<2x4x256xf32>
    tpu.vector_store %arg4[%c0_16, %c0_17, %c0_18], %31 {strides = array<i32>} : memref<2x4x256xf32, #tpu.memory_space<vmem>>, vector<2x4x256xf32>,
    return
  }
  func.func @transform_0(%arg0: i32) -> (i32, i32, i32) {
    %c0_i32 = arith.constant 0 : i32
    %c0_i32_0 = arith.constant 0 : i32
    %c0_i32_1 = arith.constant 0 : i32
    %c0_i32_2 = arith.constant 0 : i32
    return %c0_i32, %c0_i32_0, %c0_i32_1 : i32, i32, i32
  }
  func.func @transform_1(%arg0: i32) -> (i32, i32, i32) {
    %c0_i32 = arith.constant 0 : i32
    %c0_i32_0 = arith.constant 0 : i32
    %c0_i32_1 = arith.constant 0 : i32
    %c0_i32_2 = arith.constant 0 : i32
    return %c0_i32, %c0_i32_0, %c0_i32_1 : i32, i32, i32
  }
  func.func @transform_2(%arg0: i32) -> (i32, i32, i32) {
    %c0_i32 = arith.constant 0 : i32
    %c0_i32_0 = arith.constant 0 : i32
    %c0_i32_1 = arith.constant 0 : i32
    %c0_i32_2 = arith.constant 0 : i32
    return %c0_i32, %c0_i32_0, %c0_i32_1 : i32, i32, i32
  }
  func.func @transform_3(%arg0: i32) -> (i32, i32, i32) {
    %c0_i32 = arith.constant 0 : i32
    %c0_i32_0 = arith.constant 0 : i32
    %c0_i32_1 = arith.constant 0 : i32
    %c0_i32_2 = arith.constant 0 : i32
    return %c0_i32, %c0_i32_0, %c0_i32_1 : i32, i32, i32
  }
}

</mosaic_0001>

<llo_original>
// kernel: basic_layer_forward.1
$region0: #{basic_layer_forward.1}
  #allocation0 [shape = 'u32[]', space=smem, size = 0x4, offset = 0x4, fixed_abs, tag = 'smem constant byte address 0x4 - core index']
  #allocation1 [shape = 'u32[144,128]{1,0:T(1,128)}', space=vmem, size = 0x12000, scoped, tag = 'internal scratch']
  %s0 = inlined_call_operand.vmem [shape: f32[2,4,256], index: 0, kind: input, shape index: {}]
  %s1 = inlined_call_operand.vmem [shape: f32[1,4,1], index: 1, kind: input, shape index: {}]
  %s2 = inlined_call_operand.vmem [shape: f32[1,4,1], index: 2, kind: input, shape index: {}]
  %s3 = inlined_call_operand.vmem [shape: f32[2,4,256], index: 3, kind: output, shape index: {}]
  %s4 = sld [smem:[#allocation0]]
  $region22: #{basic_layer_forward.1} parent=0
    _
  %s6 = ssub.s32 1, %s4
  %s7 = scalar_select 0, %s6, %s4
  // Predicated region
  $region2: #{basic_layer_forward.1} parent=0 // pred_check
    _
  $region3: #{basic_layer_forward.1} parent=0 // pred_check_branch
    %9 = sbr.rel (0) target = $region5
  $region4: #{basic_layer_forward.1} parent=0 // pred_region
    _
  $region5: #{basic_layer_forward.1} parent=0 // pred_fallthru
    _
  // Predicated region
  $region6: #{basic_layer_forward.1} parent=0 // pred_check
    _
  $region7: #{basic_layer_forward.1} parent=0 // pred_check_branch
    %11 = sbr.rel (0) target = $region9
  $region8: #{basic_layer_forward.1} parent=0 // pred_region
    _
  $region9: #{basic_layer_forward.1} parent=0 // pred_fallthru
    _
  // Predicated region
  $region10: #{basic_layer_forward.1} parent=0 // pred_check
    _
  $region11: #{basic_layer_forward.1} parent=0 // pred_check_branch
    %13 = sbr.rel (0) target = $region13
  $region12: #{basic_layer_forward.1} parent=0 // pred_region
    _
  $region13: #{basic_layer_forward.1} parent=0 // pred_fallthru
    _
  %v14 = vld [vmem:[%s0] sm:$0xff]
  %v15 = vld [vmem:[%s0 + $0x8] sm:$0xff]
  %v18 = vcombine.high %v14, %v14
  %v19 = vcombine.high %v15, %v15
  %vm22 = vcmask 1043456
  %v23 = vsel %vm22, %v14, 0.0
  %v24 = vsel %vm22, %v18, 0.0
  %v25 = vadd.f32 %v23, %v24
  %26 = vadd.xlane.f32.xlu0 %v25
  %v27 = vpop.xlane.xlu0 %26
  %v28 = vsel %vm22, %v15, 0.0
  %v29 = vsel %vm22, %v19, 0.0
  %v30 = vadd.f32 %v28, %v29
  %31 = vadd.xlane.f32.xlu0 %v30
  %v32 = vpop.xlane.xlu0 %31
  %v33 = vsel %vm22, %v27, 0.0
  %v34 = vsel %vm22, %v32, 0.0
  %v35 = vadd.f32 %v33, %v34
  %v36 = vmul.f32 %v14, %v14
  %v37 = vmul.f32 %v15, %v15
  %v40 = vcombine.high %v36, %v36
  %v41 = vcombine.high %v37, %v37
  %v44 = vsel %vm22, %v36, 0.0
  %v45 = vsel %vm22, %v40, 0.0
  %v46 = vadd.f32 %v44, %v45
  %47 = vadd.xlane.f32.xlu0 %v46
  %v48 = vpop.xlane.xlu0 %47
  %v49 = vsel %vm22, %v37, 0.0
  %v50 = vsel %vm22, %v41, 0.0
  %v51 = vadd.f32 %v49, %v50
  %52 = vadd.xlane.f32.xlu0 %v51
  %v53 = vpop.xlane.xlu0 %52
  %v54 = vsel %vm22, %v48, 0.0
  %v55 = vsel %vm22, %v53, 0.0
  %v56 = vadd.f32 %v54, %v55
  %v57 = vmul.f32 %v35, 0.001953125
  %v58 = vmul.f32 %v56, 0.001953125
  %v59 = vmul.f32 %v57, %v57
  %v60 = vsub.f32 %v58, %v59
  %v61 = vmax.f32 %v60, 0.0
  %v62 = vadd.f32 %v61, 1e-05
  %v63 = vrsqrt.pop %v62
  %v64 = vld [vmem:[%s1] sm:$0xf]
  %v65 = vmul.f32 %v64, %v63
  %v66 = vld [vmem:[%s2] sm:$0xf]
  %v67 = vmul.f32 %v57, %v65
  %v68 = vsub.f32 %v66, %v67
  %70 = vset.pattern.permute.xlu0 0
  %71 = vperm.xlu0 %70, %v65
  %v72 = vpop.permute.xlu0 %71
  %v74 = vunpack.c.l.s4 839922192
  %v75 = vunpack.c.0.s8 %v74
  %v76 = vlaneseq
  %v77 = vshrl.u32 %v76, 7
  %v78 = vsub.s32 %v75, %v77
  %v79 = vrot.slane %v72, %v78
  %v81 = vmul.f32 %v14, %v79
  %v82 = vmul.f32 %v15, %v79
  %84 = vset.pattern.permute.xlu0 0
  %85 = vperm.xlu0 %84, %v68
  %v86 = vpop.permute.xlu0 %85
  %v88 = vunpack.c.l.s4 839922192
  %v89 = vunpack.c.0.s8 %v88
  %v90 = vlaneseq
  %v91 = vshrl.u32 %v90, 7
  %v92 = vsub.s32 %v89, %v91
  %v93 = vrot.slane %v86, %v92
  %v95 = vadd.f32 %v81, %v93
  %v96 = vadd.f32 %v82, %v93
  %v97 = vmax.f32 %v95, 0.0
  %v98 = vmax.f32 %v96, 0.0
  %99 = vst [vmem:[%s3] sm:$0xff] %v97
  %100 = vst [vmem:[%s3 + $0x8] sm:$0xff] %v98
  // Predicated region
  $region14: #{basic_layer_forward.1} parent=0 // pred_check
    _
  $region15: #{basic_layer_forward.1} parent=0 // pred_check_branch
    %102 = sbr.rel (0) target = $region17
  $region16: #{basic_layer_forward.1} parent=0 // pred_region
    _
  $region17: #{basic_layer_forward.1} parent=0 // pred_fallthru
    _
  // Predicated region
  $region18: #{basic_layer_forward.1} parent=0 // pred_check
    _
  $region19: #{basic_layer_forward.1} parent=0 // pred_check_branch
    %104 = sbr.rel (0) target = $region21
  $region20: #{basic_layer_forward.1} parent=0 // pred_region
    _
  $region21: #{basic_layer_forward.1} parent=0 // pred_fallthru
    _

</llo_original>
